<compile_context>
chip_gen: v5e
topology: v5e:2x2
jax: 0.10.0
libtpu: 0.0.40
codegen_flags: <defaults>
</compile_context>

<pallas_src>
import functools

import jax
import jax.numpy as jnp
from jax import lax
from jax.experimental import pallas as pl
from jax.experimental.pallas import tpu as pltpu


def option_critic_kernel(x_ref, w1t_ref, b_ref, w2_ref, o_ref, *, H, O):
    # In-kernel f32 -> bf16 cast of the activations (VPU, hidden under DMA).
    x_bf = x_ref[...].astype(jnp.bfloat16)
    # fc1: (B, D) contracted with lane-dense W1 (H, D) on dim D -> (B, H).
    # MXU accumulates in f32.
    h = lax.dot_general(
        x_bf, w1t_ref[...],
        dimension_numbers=(((1,), (1,)), ((), ())),
        preferred_element_type=jnp.float32)
    h = jnp.maximum(h + b_ref[0:1, 0:H], 0.0)          # bias + ReLU in f32
    # fc_options fully in f32 (K=32, N=8 -> negligible MXU cost).
    q = jnp.dot(h, w2_ref[...], preferred_element_type=jnp.float32)
    o_ref[...] = (q + b_ref[1:2, 0:O]).astype(o_ref.dtype)


def pack_params(w1t, b1, w2, b2):
    """One-time parameter conversion (do this at init, NOT per forward call).

    w1t: (H, D) float32  -- torch-native fc1.weight layout (out, in)
    b1:  (H,)
    w2:  (H, O) float32  -- fc_options.weight transposed to (in, out)
    b2:  (O,)
    """
    H, D = w1t.shape
    O = w2.shape[1]
    padw = max(128, ((max(H, O) + 127) // 128) * 128)
    assert H <= padw and O <= padw, "re-derive padw if H or O exceed 128"
    bias_packed = jnp.zeros((2, padw), jnp.float32)
    bias_packed = bias_packed.at[0, :H].set(b1.astype(jnp.float32))
    bias_packed = bias_packed.at[1, :O].set(b2.astype(jnp.float32))
    return {
        "w1t": w1t.astype(jnp.bfloat16),          # lane-dense (H, D) bf16
        "bias": bias_packed,                      # (2, padw) f32
        "w2": w2.astype(jnp.float32),             # (H, O) f32 (tiny)
    }


def procgen_option_critic(x, params, *, block_b=None):
    """Pallas forward for ProcGenOptionCritic.

    x:      (B, 3136) float32 (cast to bf16 inside the kernel)
    params: dict from pack_params()
    returns q_options: (B, O) float32
    """
    B, D = x.shape
    w1t = params["w1t"]
    bias = params["bias"]
    w2 = params["w2"]
    H, D_w = w1t.shape
    assert D_w == D
    O = w2.shape[1]
    padw = bias.shape[1]

    # --- batch tiling: whole batch per step unless B is large ----------------
    if block_b is None:
        block_b = B
        if B > 512:
            for cand in (512, 256, 128):
                if B % cand == 0:
                    block_b = cand
                    break
    assert B % block_b == 0
    nb = B // block_b

    kernel = functools.partial(option_critic_kernel, H=H, O=O)

    cost = pl.CostEstimate(
        flops=2 * B * D * H + 2 * B * H * O,
        transcendentals=0,
        bytes_accessed=(4 * B * D                 # x (f32, read in-kernel)
                        + 2 * H * D               # W1 bf16
                        + 4 * (H * O + 2 * padw + B * O)),
    )

    # Explicit VMEM limit so block_b=512 f32 x tiles also compile on v5e's
    # 16 MiB scoped default (clamped well under every chip's physical VMEM).
    vmem_needed = (2 * block_b * D * 4            # x, double-buffered f32
                   + 2 * H * D * 2                # w1t bf16
                   + 2 * 2 * padw * 4             # packed biases
                   + 2 * H * 128 * 4              # w2 (lane-padded)
                   + 2 * block_b * 128 * 4        # output (lane-padded)
                   + (2 << 20))                   # headroom
    vmem_limit = int(min(max(vmem_needed, 16 * 1024 * 1024), 48 * 1024 * 1024))

    out = pl.pallas_call(
        kernel,
        out_shape=jax.ShapeDtypeStruct((B, O), jnp.float32),
        grid=(nb,),
        in_specs=[
            pl.BlockSpec((block_b, D), lambda i: (i, 0)),   # x tile (f32)
            pl.BlockSpec((H, D), lambda i: (0, 0)),         # W1 lane-dense bf16
            pl.BlockSpec((2, padw), lambda i: (0, 0)),      # packed biases
            pl.BlockSpec((H, O), lambda i: (0, 0)),         # W2 (f32, tiny)
        ],
        out_specs=pl.BlockSpec((block_b, O), lambda i: (i, 0)),
        compiler_params=pltpu.CompilerParams(
            dimension_semantics=("parallel",),
            vmem_limit_bytes=vmem_limit,
        ),
        cost_estimate=cost,
    )(x, w1t, bias, w2)
    return out


def init_params(key, in_dim, hidden_dim, num_options):
    """Deterministic init mimicking PyTorch nn.Linear defaults
    (uniform(-1/sqrt(fan_in), 1/sqrt(fan_in)) for weight and bias).

    fc1 weight is kept in torch-native (out=H, in=D) layout (lane-dense for
    the kernel); fc_options weight is stored (in=H, out=O)."""
    k1, k2, k3, k4 = jax.random.split(key, 4)
    bound1 = 1.0 / jnp.sqrt(jnp.float32(in_dim))
    bound2 = 1.0 / jnp.sqrt(jnp.float32(hidden_dim))
    w1t = jax.random.uniform(k1, (hidden_dim, in_dim), jnp.float32, -bound1, bound1)
    b1 = jax.random.uniform(k2, (hidden_dim,), jnp.float32, -bound1, bound1)
    w2 = jax.random.uniform(k3, (hidden_dim, num_options), jnp.float32, -bound2, bound2)
    b2 = jax.random.uniform(k4, (num_options,), jnp.float32, -bound2, bound2)
    return w1t, b1, w2, b2


if __name__ == "__main__":
    key = jax.random.PRNGKey(0)
    kx, kp = jax.random.split(key)

    batch = 8
    in_dim = 64 * 7 * 7       # 3136, fixed by the module
    hidden_dim = 32
    num_options = 8

    x = jax.random.normal(kx, (batch, in_dim), jnp.float32)
    w1t, b1, w2, b2 = init_params(kp, in_dim, hidden_dim, num_options)

    # One-time parameter conversion (bf16 weight, packed biases).
    params = pack_params(w1t, b1, w2, b2)

    q_options = procgen_option_critic(x, params)
    q_options = jax.block_until_ready(q_options)
    assert q_options.shape == (batch, num_options)

    # Reference emulating the kernel's numerics (bf16 x/W1, f32 everything else).
    xb = x.astype(jnp.bfloat16).astype(jnp.float32)
    w1b = w1t.astype(jnp.bfloat16).astype(jnp.float32)
    h_ref = jnp.maximum(xb @ w1b.T + b1, 0.0)
    q_ref = h_ref @ w2 + b2
    assert jnp.allclose(q_options, q_ref, atol=2e-2, rtol=2e-2)

    # Sanity: close to the pure-f32 PyTorch-equivalent forward as well.
    q_f32 = jnp.maximum(x @ w1t.T + b1, 0.0) @ w2 + b2
    assert jnp.allclose(q_options, q_f32, atol=1e-1, rtol=1e-1)

    print("KERNEL_OK")
</pallas_src>

<mosaic_0001>
module attributes {stable_mosaic.version = 11 : i64} {
  func.func @option_critic_kernel(%arg0: i32, %arg1: memref<8x3136xf32, #tpu.memory_space<vmem>>, %arg2: memref<32x3136xbf16, #tpu.memory_space<vmem>>, %arg3: memref<2x128xf32, #tpu.memory_space<vmem>>, %arg4: memref<32x8xf32, #tpu.memory_space<vmem>>, %arg5: memref<8x8xf32, #tpu.memory_space<vmem>>) attributes {dimension_semantics = [#tpu.dimension_semantics<parallel>], iteration_bounds = array<i64: 1>, scalar_prefetch = 0 : i64, scratch_operands = 0 : i64, tpu.core_type = #tpu.core_type<tc>, window_params = [{transform_indices = @transform_0, window_bounds = array<i64: 8, 3136>}, {pipeline_mode = #tpu.pipeline_mode<synchronous>, transform_indices = @transform_1, window_bounds = array<i64: 32, 3136>}, {pipeline_mode = #tpu.pipeline_mode<synchronous>, transform_indices = @transform_2, window_bounds = array<i64: 2, 128>}, {pipeline_mode = #tpu.pipeline_mode<synchronous>, transform_indices = @transform_3, window_bounds = array<i64: 32, 8>}, {transform_indices = @transform_4, window_bounds = array<i64: 8, 8>}]} {
    %c0 = arith.constant 0 : index
    %c0_0 = arith.constant 0 : index
    %0 = vector.load %arg1[%c0, %c0_0] : memref<8x3136xf32, #tpu.memory_space<vmem>>, vector<8x3136xf32>
    %1 = arith.truncf %0 : vector<8x3136xf32> to vector<8x3136xbf16>
    %c0_1 = arith.constant 0 : index
    %c0_2 = arith.constant 0 : index
    %2 = vector.load %arg2[%c0_1, %c0_2] : memref<32x3136xbf16, #tpu.memory_space<vmem>>, vector<32x3136xbf16>
    %cst = arith.constant dense<0.000000e+00> : vector<8x32xf32>
    %3 = tpu.matmul %1, %2, %cst {dimension_numbers = #tpu.dot_dimension_numbers<[1], [1], [0], [0], [0, 0, 1, 0], [], []>} : vector<8x3136xbf16>, vector<32x3136xbf16>, vector<8x32xf32> -> vector<8x32xf32>
    %c0_3 = arith.constant 0 : index
    %c0_4 = arith.constant 0 : index
    %4 = vector.load %arg3[%c0_3, %c0_4] : memref<2x128xf32, #tpu.memory_space<vmem>>, vector<1x32xf32>
    %5 = vector.broadcast %4 : vector<1x32xf32> to vector<8x32xf32>
    %6 = arith.addf %3, %5 : vector<8x32xf32>
    %cst_5 = arith.constant 0.000000e+00 : f32
    %7 = vector.broadcast %cst_5 : f32 to vector<8x32xf32>
    %8 = arith.maximumf %6, %7 : vector<8x32xf32>
    %c0_6 = arith.constant 0 : index
    %c0_7 = arith.constant 0 : index
    %9 = vector.load %arg4[%c0_6, %c0_7] : memref<32x8xf32, #tpu.memory_space<vmem>>, vector<32x8xf32>
    %cst_8 = arith.constant dense<0.000000e+00> : vector<8x8xf32>
    %10 = tpu.matmul %8, %9, %cst_8 {dimension_numbers = #tpu.dot_dimension_numbers<[1], [0], [0], [1], [0, 0, 1, 1], [], []>} : vector<8x32xf32>, vector<32x8xf32>, vector<8x8xf32> -> vector<8x8xf32>
    %c1 = arith.constant 1 : index
    %c0_9 = arith.constant 0 : index
    %11 = vector.load %arg3[%c1, %c0_9] : memref<2x128xf32, #tpu.memory_space<vmem>>, vector<1x8xf32>
    %12 = vector.broadcast %11 : vector<1x8xf32> to vector<8x8xf32>
    %13 = arith.addf %10, %12 : vector<8x8xf32>
    %c0_10 = arith.constant 0 : index
    %c0_11 = arith.constant 0 : index
    %14 = vector.load %arg5[%c0_10, %c0_11] : memref<8x8xf32, #tpu.memory_space<vmem>>, vector<8x8xf32>
    tpu.vector_store %arg5[%c0_10, %c0_11], %13 {strides = array<i32>} : memref<8x8xf32, #tpu.memory_space<vmem>>, vector<8x8xf32>,
    return
  }
  func.func @transform_0(%arg0: i32) -> (i32, i32) {
    %c0_i32 = arith.constant 0 : i32
    %c0_i32_0 = arith.constant 0 : i32
    return %arg0, %c0_i32 : i32, i32
  }
  func.func @transform_1(%arg0: i32) -> (i32, i32) {
    %c0_i32 = arith.constant 0 : i32
    %c0_i32_0 = arith.constant 0 : i32
    %c0_i32_1 = arith.constant 0 : i32
    return %c0_i32, %c0_i32_0 : i32, i32
  }
  func.func @transform_2(%arg0: i32) -> (i32, i32) {
    %c0_i32 = arith.constant 0 : i32
    %c0_i32_0 = arith.constant 0 : i32
    %c0_i32_1 = arith.constant 0 : i32
    return %c0_i32, %c0_i32_0 : i32, i32
  }
  func.func @transform_3(%arg0: i32) -> (i32, i32) {
    %c0_i32 = arith.constant 0 : i32
    %c0_i32_0 = arith.constant 0 : i32
    %c0_i32_1 = arith.constant 0 : i32
    return %c0_i32, %c0_i32_0 : i32, i32
  }
  func.func @transform_4(%arg0: i32) -> (i32, i32) {
    %c0_i32 = arith.constant 0 : i32
    %c0_i32_0 = arith.constant 0 : i32
    return %arg0, %c0_i32 : i32, i32
  }
}

</mosaic_0001>

<llo_original>
// kernel: tpu_custom_call.1
$region0: #{tpu_custom_call.1}
  #allocation0 [shape = 'u32[]', space=smem, size = 0x4, offset = 0x4, fixed_abs, tag = 'smem constant byte address 0x4 - core index']
  #allocation1 [shape = 'u32[72,128]{1,0:T(1,128)}', space=vmem, size = 0x9000, scoped, tag = 'internal scratch']
  %s0 = inlined_call_operand.hbm [shape: f32[8,3136], index: 0, kind: input, shape index: {}]
  %s1 = inlined_call_operand.hbm [shape: bf16[32,3136], index: 1, kind: input, shape index: {}]
  %s2 = inlined_call_operand.vmem [shape: f32[2,128], index: 2, kind: input, shape index: {}]
  %s3 = inlined_call_operand.vmem [shape: f32[32,8], index: 3, kind: input, shape index: {}]
  %s4 = inlined_call_operand.hbm [shape: f32[8,8], index: 4, kind: output, shape index: {}]
  %s5 = sld [smem:[#allocation0]]
  $region34: #{tpu_custom_call.1} parent=0
    _
  %s7 = ssub.s32 1, %s5
  %s8 = scalar_select 0, %s7, %s5
  $region1: #{tpu_custom_call.1} parent=0
    #allocation2 [shape = 'u8[102400]{0}', space=vmem, size = 0x19000, scoped, tag = 'input window, operand 0, single buffered']
    #allocation3 [shape = 's32[1]{0}', space=sflag, size = 0x4, scoped, tag = 'scoped memory for tpu_custom_call.1']
    #allocation4 [shape = 's32[1]{0}', space=sflag, size = 0x4, scoped, tag = 'scoped memory for tpu_custom_call.1']
    #allocation5 [shape = 'u8[204800]{0}', space=vmem, size = 0x32000, scoped, tag = 'input window, operand 1, single buffered']
    #allocation6 [shape = 's32[1]{0}', space=sflag, size = 0x4, scoped, tag = 'scoped memory for tpu_custom_call.1']
    #allocation7 [shape = 'u8[4096]{0}', space=vmem, size = 0x1000, scoped, tag = 'output window, operand 0, single buffered']
    %9 = vsyncpa [#allocation3], 0
    %10 = vsyncpa [#allocation6], 0
    %11 = vsyncpa [#allocation4], 0
    // Predicated region
    $region2: #{tpu_custom_call.1} parent=1 // pred_check
      _
    $region3: #{tpu_custom_call.1} parent=1 // pred_check_branch
      %13 = sbr.rel (0) target = $region5
    $region4: #{tpu_custom_call.1} parent=1 // pred_region
      %15 = vsyncadd [#allocation3], 0
      %s17 = sshll.u32 %s0, 4
      %s18 = int_to_ptr.hbm [resolvable:$true] %s17
      %s19 = sshll.u32 [#allocation2], 4
      %s20 = int_to_ptr.vmem [resolvable:$true] %s19
      %22 = dma.hbm_to_vmem [thread:$0]  %s18, 3200, %s20, [#allocation3]
    $region5: #{tpu_custom_call.1} parent=1 // pred_fallthru
      _
    // Predicated region
    $region6: #{tpu_custom_call.1} parent=1 // pred_check
      _
    $region7: #{tpu_custom_call.1} parent=1 // pred_check_branch
      %24 = sbr.rel (0) target = $region9
    $region8: #{tpu_custom_call.1} parent=1 // pred_region
      %26 = vsyncadd [#allocation6], 0
      %s27 = sshll.u32 %s1, 4
      %s28 = int_to_ptr.hbm [resolvable:$true] %s27
      %s29 = sshll.u32 [#allocation5], 4
      %s30 = int_to_ptr.vmem [resolvable:$true] %s29
      %35 = dma.hbm_to_vmem [thread:$0]  %s28, 6400, %s30, [#allocation6], 1600, 1600, 100
    $region9: #{tpu_custom_call.1} parent=1 // pred_fallthru
      _
    // Predicated region
    $region10: #{tpu_custom_call.1} parent=1 // pred_check
      _
    $region11: #{tpu_custom_call.1} parent=1 // pred_check_branch
      %37 = sbr.rel (0) target = $region13
    $region12: #{tpu_custom_call.1} parent=1 // pred_region
      _
    $region13: #{tpu_custom_call.1} parent=1 // pred_fallthru
      _
    // Predicated region
    $region14: #{tpu_custom_call.1} parent=1 // pred_check
      _
    $region15: #{tpu_custom_call.1} parent=1 // pred_check_branch
      %39 = sbr.rel (0) target = $region17
    $region16: #{tpu_custom_call.1} parent=1 // pred_region
      _
    $region17: #{tpu_custom_call.1} parent=1 // pred_fallthru
      _
    // Predicated region
    $region18: #{tpu_custom_call.1} parent=1 // pred_check
      _
    $region19: #{tpu_custom_call.1} parent=1 // pred_check_branch
      %41 = sbr.rel (0) target = $region21
    $region20: #{tpu_custom_call.1} parent=1 // pred_region
      %43 = dma.done [#allocation3], 3200
    $region21: #{tpu_custom_call.1} parent=1 // pred_fallthru
      _
    // Predicated region
    $region22: #{tpu_custom_call.1} parent=1 // pred_check
      _
    $region23: #{tpu_custom_call.1} parent=1 // pred_check_branch
      %45 = sbr.rel (0) target = $region25
    $region24: #{tpu_custom_call.1} parent=1 // pred_region
      %47 = dma.done [#allocation6], 6400
    $region25: #{tpu_custom_call.1} parent=1 // pred_fallthru
      _
    %v49 = vld [vmem:[#allocation2] sm:$0xff]
    %v50 = vld [vmem:[#allocation2 + $0x8] sm:$0xff]
    %v51 = vld [vmem:[#allocation2 + $0x10] sm:$0xff]
    %v52 = vld [vmem:[#allocation2 + $0x18] sm:$0xff]
    %v53 = vld [vmem:[#allocation2 + $0x20] sm:$0xff]
    %v54 = vld [vmem:[#allocation2 + $0x28] sm:$0xff]
    %v55 = vld [vmem:[#allocation2 + $0x30] sm:$0xff]
    %v56 = vld [vmem:[#allocation2 + $0x38] sm:$0xff]
    %v57 = vld [vmem:[#allocation2 + $0x40] sm:$0xff]
    %v58 = vld [vmem:[#allocation2 + $0x48] sm:$0xff]
    %v59 = vld [vmem:[#allocation2 + $0x50] sm:$0xff]
    %v60 = vld [vmem:[#allocation2 + $0x58] sm:$0xff]
    %v61 = vld [vmem:[#allocation2 + $0x60] sm:$0xff]
    %v62 = vld [vmem:[#allocation2 + $0x68] sm:$0xff]
    %v63 = vld [vmem:[#allocation2 + $0x70] sm:$0xff]
    %v64 = vld [vmem:[#allocation2 + $0x78] sm:$0xff]
    %v65 = vld [vmem:[#allocation2 + $0x80] sm:$0xff]
    %v66 = vld [vmem:[#allocation2 + $0x88] sm:$0xff]
    %v67 = vld [vmem:[#allocation2 + $0x90] sm:$0xff]
    %v68 = vld [vmem:[#allocation2 + $0x98] sm:$0xff]
    %v69 = vld [vmem:[#allocation2 + $0xa0] sm:$0xff]
    %v70 = vld [vmem:[#allocation2 + $0xa8] sm:$0xff]
    %v71 = vld [vmem:[#allocation2 + $0xb0] sm:$0xff]
    %v72 = vld [vmem:[#allocation2 + $0xb8] sm:$0xff]
    %v73 = vld [vmem:[#allocation2 + $0xc0] sm:$0xff]
    %v74 = vpack.c.bf16 %v49, %v49
    %v75 = vpack.c.bf16 %v50, %v50
    %v76 = vpack.c.bf16 %v51, %v51
    %v77 = vpack.c.bf16 %v52, %v52
    %v78 = vpack.c.bf16 %v53, %v53
    %v79 = vpack.c.bf16 %v54, %v54
    %v80 = vpack.c.bf16 %v55, %v55
    %v81 = vpack.c.bf16 %v56, %v56
    %v82 = vpack.c.bf16 %v57, %v57
    %v83 = vpack.c.bf16 %v58, %v58
    %v84 = vpack.c.bf16 %v59, %v59
    %v85 = vpack.c.bf16 %v60, %v60
    %v86 = vpack.c.bf16 %v61, %v61
    %v87 = vpack.c.bf16 %v62, %v62
    %v88 = vpack.c.bf16 %v63, %v63
    %v89 = vpack.c.bf16 %v64, %v64
    %v90 = vpack.c.bf16 %v65, %v65
    %v91 = vpack.c.bf16 %v66, %v66
    %v92 = vpack.c.bf16 %v67, %v67
    %v93 = vpack.c.bf16 %v68, %v68
    %v94 = vpack.c.bf16 %v69, %v69
    %v95 = vpack.c.bf16 %v70, %v70
    %v96 = vpack.c.bf16 %v71, %v71
    %v97 = vpack.c.bf16 %v72, %v72
    %v98 = vpack.c.bf16 %v73, %v73
    %v99 = vld [vmem:[#allocation5] sm:$0xff]
    %v100 = vld [vmem:[#allocation5 + $0x8] sm:$0xff]
    %v101 = vld [vmem:[#allocation5 + $0x10] sm:$0xff]
    %v102 = vld [vmem:[#allocation5 + $0x18] sm:$0xff]
    %v103 = vld [vmem:[#allocation5 + $0x20] sm:$0xff]
    %v104 = vld [vmem:[#allocation5 + $0x28] sm:$0xff]
    %v105 = vld [vmem:[#allocation5 + $0x30] sm:$0xff]
    %v106 = vld [vmem:[#allocation5 + $0x38] sm:$0xff]
    %v107 = vld [vmem:[#allocation5 + $0x40] sm:$0xff]
    %v108 = vld [vmem:[#allocation5 + $0x48] sm:$0xff]
    %v109 = vld [vmem:[#allocation5 + $0x50] sm:$0xff]
    %v110 = vld [vmem:[#allocation5 + $0x58] sm:$0xff]
    %v111 = vld [vmem:[#allocation5 + $0x60] sm:$0xf]
    %v112 = vld [vmem:[#allocation5 + $0x64] sm:$0xff]
    %v113 = vld [vmem:[#allocation5 + $0x6c] sm:$0xff]
    %v114 = vld [vmem:[#allocation5 + $0x74] sm:$0xff]
    %v115 = vld [vmem:[#allocation5 + $0x7c] sm:$0xff]
    %v116 = vld [vmem:[#allocation5 + $0x84] sm:$0xff]
    %v117 = vld [vmem:[#allocation5 + $0x8c] sm:$0xff]
    %v118 = vld [vmem:[#allocation5 + $0x94] sm:$0xff]
    %v119 = vld [vmem:[#allocation5 + $0x9c] sm:$0xff]
    %v120 = vld [vmem:[#allocation5 + $0xa4] sm:$0xff]
    %v121 = vld [vmem:[#allocation5 + $0xac] sm:$0xff]
    %v122 = vld [vmem:[#allocation5 + $0xb4] sm:$0xff]
    %v123 = vld [vmem:[#allocation5 + $0xbc] sm:$0xff]
    %v124 = vld [vmem:[#allocation5 + $0xc4] sm:$0xf]
    %v125 = vld [vmem:[#allocation5 + $0xc8] sm:$0xff]
    %v126 = vld [vmem:[#allocation5 + $0xd0] sm:$0xff]
    %v127 = vld [vmem:[#allocation5 + $0xd8] sm:$0xff]
    %v128 = vld [vmem:[#allocation5 + $0xe0] sm:$0xff]
    %v129 = vld [vmem:[#allocation5 + $0xe8] sm:$0xff]
    %v130 = vld [vmem:[#allocation5 + $0xf0] sm:$0xff]
    %v131 = vld [vmem:[#allocation5 + $0xf8] sm:$0xff]
    %v132 = vld [vmem:[#allocation5 + $0x100] sm:$0xff]
    %v133 = vld [vmem:[#allocation5 + $0x108] sm:$0xff]
    %v134 = vld [vmem:[#allocation5 + $0x110] sm:$0xff]
    %v135 = vld [vmem:[#allocation5 + $0x118] sm:$0xff]
    %v136 = vld [vmem:[#allocation5 + $0x120] sm:$0xff]
    %v137 = vld [vmem:[#allocation5 + $0x128] sm:$0xf]
    %v138 = vld [vmem:[#allocation5 + $0x12c] sm:$0xff]
    %v139 = vld [vmem:[#allocation5 + $0x134] sm:$0xff]
    %v140 = vld [vmem:[#allocation5 + $0x13c] sm:$0xff]
    %v141 = vld [vmem:[#allocation5 + $0x144] sm:$0xff]
    %v142 = vld [vmem:[#allocation5 + $0x14c] sm:$0xff]
    %v143 = vld [vmem:[#allocation5 + $0x154] sm:$0xff]
    %v144 = vld [vmem:[#allocation5 + $0x15c] sm:$0xff]
    %v145 = vld [vmem:[#allocation5 + $0x164] sm:$0xff]
    %v146 = vld [vmem:[#allocation5 + $0x16c] sm:$0xff]
    %v147 = vld [vmem:[#allocation5 + $0x174] sm:$0xff]
    %v148 = vld [vmem:[#allocation5 + $0x17c] sm:$0xff]
    %v149 = vld [vmem:[#allocation5 + $0x184] sm:$0xff]
    %v150 = vld [vmem:[#allocation5 + $0x18c] sm:$0xf]
    %v151 = vld [vmem:[%s2] sm:$0x1]
    %v152 = vperm.slane %v151, 0
    %v205 = vunpack.c.l.b16 %v99
    %v206 = vunpack.c.h.b16 %v99
    %v207 = vunpack.c.l.b16 %v100
    %v208 = vunpack.c.h.b16 %v100
    %v209 = vunpack.c.l.b16 %v101
    %v210 = vunpack.c.h.b16 %v101
    %v211 = vunpack.c.l.b16 %v102
    %v212 = vunpack.c.h.b16 %v102
    %v213 = vunpack.c.l.b16 %v103
    %v214 = vunpack.c.h.b16 %v103
    %v215 = vunpack.c.l.b16 %v104
    %v216 = vunpack.c.h.b16 %v104
    %v217 = vunpack.c.l.b16 %v105
    %v218 = vunpack.c.h.b16 %v105
    %v219 = vunpack.c.l.b16 %v106
    %v220 = vunpack.c.h.b16 %v106
    %v221 = vunpack.c.l.b16 %v107
    %v222 = vunpack.c.h.b16 %v107
    %v223 = vunpack.c.l.b16 %v108
    %v224 = vunpack.c.h.b16 %v108
    %v225 = vunpack.c.l.b16 %v109
    %v226 = vunpack.c.h.b16 %v109
    %v227 = vunpack.c.l.b16 %v110
    %v228 = vunpack.c.h.b16 %v110
    %v229 = vunpack.c.l.b16 %v111
    %v230 = vunpack.c.l.b16 %v112
    %v231 = vunpack.c.h.b16 %v112
    %v232 = vunpack.c.l.b16 %v113
    %v233 = vunpack.c.h.b16 %v113
    %v234 = vunpack.c.l.b16 %v114
    %v235 = vunpack.c.h.b16 %v114
    %v236 = vunpack.c.l.b16 %v115
    %v237 = vunpack.c.h.b16 %v115
    %v238 = vunpack.c.l.b16 %v116
    %v239 = vunpack.c.h.b16 %v116
    %v240 = vunpack.c.l.b16 %v117
    %v241 = vunpack.c.h.b16 %v117
    %v242 = vunpack.c.l.b16 %v118
    %v243 = vunpack.c.h.b16 %v118
    %v244 = vunpack.c.l.b16 %v119
    %v245 = vunpack.c.h.b16 %v119
    %v246 = vunpack.c.l.b16 %v120
    %v247 = vunpack.c.h.b16 %v120
    %v248 = vunpack.c.l.b16 %v121
    %v249 = vunpack.c.h.b16 %v121
    %v250 = vunpack.c.l.b16 %v122
    %v251 = vunpack.c.h.b16 %v122
    %v252 = vunpack.c.l.b16 %v123
    %v253 = vunpack.c.h.b16 %v123
    %v254 = vunpack.c.l.b16 %v124
    %v255 = vunpack.c.l.b16 %v125
    %v256 = vunpack.c.h.b16 %v125
    %v257 = vunpack.c.l.b16 %v126
    %v258 = vunpack.c.h.b16 %v126
    %v259 = vunpack.c.l.b16 %v127
    %v260 = vunpack.c.h.b16 %v127
    %v261 = vunpack.c.l.b16 %v128
    %v262 = vunpack.c.h.b16 %v128
    %v263 = vunpack.c.l.b16 %v129
    %v264 = vunpack.c.h.b16 %v129
    %v265 = vunpack.c.l.b16 %v130
    %v266 = vunpack.c.h.b16 %v130
    %v267 = vunpack.c.l.b16 %v131
    %v268 = vunpack.c.h.b16 %v131
    %v269 = vunpack.c.l.b16 %v132
    %v270 = vunpack.c.h.b16 %v132
    %v271 = vunpack.c.l.b16 %v133
    %v272 = vunpack.c.h.b16 %v133
    %v273 = vunpack.c.l.b16 %v134
    %v274 = vunpack.c.h.b16 %v134
    %v275 = vunpack.c.l.b16 %v135
    %v276 = vunpack.c.h.b16 %v135
    %v277 = vunpack.c.l.b16 %v136
    %v278 = vunpack.c.h.b16 %v136
    %v279 = vunpack.c.l.b16 %v137
    %v280 = vunpack.c.l.b16 %v138
    %v281 = vunpack.c.h.b16 %v138
    %v282 = vunpack.c.l.b16 %v139
    %v283 = vunpack.c.h.b16 %v139
    %v284 = vunpack.c.l.b16 %v140
    %v285 = vunpack.c.h.b16 %v140
    %v286 = vunpack.c.l.b16 %v141
    %v287 = vunpack.c.h.b16 %v141
    %v288 = vunpack.c.l.b16 %v142
    %v289 = vunpack.c.h.b16 %v142
    %v290 = vunpack.c.l.b16 %v143
    %v291 = vunpack.c.h.b16 %v143
    %v292 = vunpack.c.l.b16 %v144
    %v293 = vunpack.c.h.b16 %v144
    %v294 = vunpack.c.l.b16 %v145
    %v295 = vunpack.c.h.b16 %v145
    %v296 = vunpack.c.l.b16 %v146
    %v297 = vunpack.c.h.b16 %v146
    %v298 = vunpack.c.l.b16 %v147
    %v299 = vunpack.c.h.b16 %v147
    %v300 = vunpack.c.l.b16 %v148
    %v301 = vunpack.c.h.b16 %v148
    %v302 = vunpack.c.l.b16 %v149
    %v303 = vunpack.c.h.b16 %v149
    %v304 = vunpack.c.l.b16 %v150
    %v305 = vpack.c.b16 %v230, %v205
    %v306 = vpack.c.b16 %v231, %v206
    %v307 = vpack.c.b16 %v232, %v207
    %v308 = vpack.c.b16 %v233, %v208
    %v309 = vpack.c.b16 %v234, %v209
    %v310 = vpack.c.b16 %v235, %v210
    %v311 = vpack.c.b16 %v236, %v211
    %v312 = vpack.c.b16 %v237, %v212
    %v313 = vpack.c.b16 %v238, %v213
    %v314 = vpack.c.b16 %v239, %v214
    %v315 = vpack.c.b16 %v240, %v215
    %v316 = vpack.c.b16 %v241, %v216
    %v317 = vpack.c.b16 %v242, %v217
    %v318 = vpack.c.b16 %v243, %v218
    %v319 = vpack.c.b16 %v244, %v219
    %v320 = vpack.c.b16 %v245, %v220
    %v321 = vpack.c.b16 %v246, %v221
    %v322 = vpack.c.b16 %v247, %v222
    %v323 = vpack.c.b16 %v248, %v223
    %v324 = vpack.c.b16 %v249, %v224
    %v325 = vpack.c.b16 %v250, %v225
    %v326 = vpack.c.b16 %v251, %v226
    %v327 = vpack.c.b16 %v252, %v227
    %v328 = vpack.c.b16 %v253, %v228
    %v329 = vpack.c.b16 %v254, %v229
    %v330 = vpack.c.b16 %v280, %v255
    %v331 = vpack.c.b16 %v281, %v256
    %v332 = vpack.c.b16 %v282, %v257
    %v333 = vpack.c.b16 %v283, %v258
    %v334 = vpack.c.b16 %v284, %v259
    %v335 = vpack.c.b16 %v285, %v260
    %v336 = vpack.c.b16 %v286, %v261
    %v337 = vpack.c.b16 %v287, %v262
    %v338 = vpack.c.b16 %v288, %v263
    %v339 = vpack.c.b16 %v289, %v264
    %v340 = vpack.c.b16 %v290, %v265
    %v341 = vpack.c.b16 %v291, %v266
    %v342 = vpack.c.b16 %v292, %v267
    %v343 = vpack.c.b16 %v293, %v268
    %v344 = vpack.c.b16 %v294, %v269
    %v345 = vpack.c.b16 %v295, %v270
    %v346 = vpack.c.b16 %v296, %v271
    %v347 = vpack.c.b16 %v297, %v272
    %v348 = vpack.c.b16 %v298, %v273
    %v349 = vpack.c.b16 %v299, %v274
    %v350 = vpack.c.b16 %v300, %v275
    %v351 = vpack.c.b16 %v301, %v276
    %v352 = vpack.c.b16 %v302, %v277
    %v353 = vpack.c.b16 %v303, %v278
    %v354 = vpack.c.b16 %v304, %v279
    %vm403 = vcmask 523264
    %v405 = vsel %vm403, %v98, 0
    %v408 = vsel %vm403, %v329, 0
    %v411 = vsel %vm403, %v354, 0
    %413 = vmatpush.bf16.xpose.msra.mxu0 0
    %414 = vmatpush.bf16.xpose.msra.mxu0 0
    %415 = vmatpush.bf16.xpose.msra.mxu0 0
    %416 = vmatpush.bf16.xpose.msra.mxu0 0
    %417 = vmatpush.bf16.xpose.msra.mxu0 0
    %418 = vmatpush.bf16.xpose.msra.mxu0 0
    %419 = vmatpush.bf16.xpose.msra.mxu0 %v330
    %420 = vmatpush.bf16.xpose.msra.mxu0 %v305
    %421 = vmatmul.bf16.gmra.mxu0 %v74
    %v422 = vpop.f32.mrf.mxu0
    %v423 = vadd.f32 %v152, %v422
    %v424 = vpop.f32.mrf.mxu0
    %425 = vdwg.mxu0
    %426 = vmatpush.bf16.xpose.msra.mxu0 0
    %427 = vmatpush.bf16.xpose.msra.mxu0 0
    %428 = vmatpush.bf16.xpose.msra.mxu0 0
    %429 = vmatpush.bf16.xpose.msra.mxu0 0
    %430 = vmatpush.bf16.xpose.msra.mxu0 0
    %431 = vmatpush.bf16.xpose.msra.mxu0 0
    %432 = vmatpush.bf16.xpose.msra.mxu0 %v331
    %433 = vmatpush.bf16.xpose.msra.mxu0 %v306
    %434 = vmatmul.bf16.gmra.mxu0 %v75
    %v435 = vpop.f32.mrf.mxu0
    %v436 = vadd.f32 %v423, %v435
    %v437 = vpop.f32.mrf.mxu0
    %438 = vdwg.mxu0
    %439 = vmatpush.bf16.xpose.msra.mxu0 0
    %440 = vmatpush.bf16.xpose.msra.mxu0 0
    %441 = vmatpush.bf16.xpose.msra.mxu0 0
    %442 = vmatpush.bf16.xpose.msra.mxu0 0
    %443 = vmatpush.bf16.xpose.msra.mxu0 0
    %444 = vmatpush.bf16.xpose.msra.mxu0 0
    %445 = vmatpush.bf16.xpose.msra.mxu0 %v332
    %446 = vmatpush.bf16.xpose.msra.mxu0 %v307
    %447 = vmatmul.bf16.gmra.mxu0 %v76
    %v448 = vpop.f32.mrf.mxu0
    %v449 = vadd.f32 %v436, %v448
    %v450 = vpop.f32.mrf.mxu0
    %451 = vdwg.mxu0
    %452 = vmatpush.bf16.xpose.msra.mxu0 0
    %453 = vmatpush.bf16.xpose.msra.mxu0 0
    %454 = vmatpush.bf16.xpose.msra.mxu0 0
    %455 = vmatpush.bf16.xpose.msra.mxu0 0
    %456 = vmatpush.bf16.xpose.msra.mxu0 0
    %457 = vmatpush.bf16.xpose.msra.mxu0 0
    %458 = vmatpush.bf16.xpose.msra.mxu0 %v333
    %459 = vmatpush.bf16.xpose.msra.mxu0 %v308
    %460 = vmatmul.bf16.gmra.mxu0 %v77
    %v461 = vpop.f32.mrf.mxu0
    %v462 = vadd.f32 %v449, %v461
    %v463 = vpop.f32.mrf.mxu0
    %464 = vdwg.mxu0
    %465 = vmatpush.bf16.xpose.msra.mxu0 0
    %466 = vmatpush.bf16.xpose.msra.mxu0 0
    %467 = vmatpush.bf16.xpose.msra.mxu0 0
    %468 = vmatpush.bf16.xpose.msra.mxu0 0
    %469 = vmatpush.bf16.xpose.msra.mxu0 0
    %470 = vmatpush.bf16.xpose.msra.mxu0 0
    %471 = vmatpush.bf16.xpose.msra.mxu0 %v334
    %472 = vmatpush.bf16.xpose.msra.mxu0 %v309
    %473 = vmatmul.bf16.gmra.mxu0 %v78
    %v474 = vpop.f32.mrf.mxu0
    %v475 = vadd.f32 %v462, %v474
    %v476 = vpop.f32.mrf.mxu0
    %477 = vdwg.mxu0
    %478 = vmatpush.bf16.xpose.msra.mxu0 0
    %479 = vmatpush.bf16.xpose.msra.mxu0 0
    %480 = vmatpush.bf16.xpose.msra.mxu0 0
    %481 = vmatpush.bf16.xpose.msra.mxu0 0
    %482 = vmatpush.bf16.xpose.msra.mxu0 0
    %483 = vmatpush.bf16.xpose.msra.mxu0 0
    %484 = vmatpush.bf16.xpose.msra.mxu0 %v335
    %485 = vmatpush.bf16.xpose.msra.mxu0 %v310
    %486 = vmatmul.bf16.gmra.mxu0 %v79
    %v487 = vpop.f32.mrf.mxu0
    %v488 = vadd.f32 %v475, %v487
    %v489 = vpop.f32.mrf.mxu0
    %490 = vdwg.mxu0
    %491 = vmatpush.bf16.xpose.msra.mxu0 0
    %492 = vmatpush.bf16.xpose.msra.mxu0 0
    %493 = vmatpush.bf16.xpose.msra.mxu0 0
    %494 = vmatpush.bf16.xpose.msra.mxu0 0
    %495 = vmatpush.bf16.xpose.msra.mxu0 0
    %496 = vmatpush.bf16.xpose.msra.mxu0 0
    %497 = vmatpush.bf16.xpose.msra.mxu0 %v336
    %498 = vmatpush.bf16.xpose.msra.mxu0 %v311
    %499 = vmatmul.bf16.gmra.mxu0 %v80
    %v500 = vpop.f32.mrf.mxu0
    %v501 = vadd.f32 %v488, %v500
    %v502 = vpop.f32.mrf.mxu0
    %503 = vdwg.mxu0
    %504 = vmatpush.bf16.xpose.msra.mxu0 0
    %505 = vmatpush.bf16.xpose.msra.mxu0 0
    %506 = vmatpush.bf16.xpose.msra.mxu0 0
    %507 = vmatpush.bf16.xpose.msra.mxu0 0
    %508 = vmatpush.bf16.xpose.msra.mxu0 0
    %509 = vmatpush.bf16.xpose.msra.mxu0 0
    %510 = vmatpush.bf16.xpose.msra.mxu0 %v337
    %511 = vmatpush.bf16.xpose.msra.mxu0 %v312
    %512 = vmatmul.bf16.gmra.mxu0 %v81
    %v513 = vpop.f32.mrf.mxu0
    %v514 = vadd.f32 %v501, %v513
    %v515 = vpop.f32.mrf.mxu0
    %516 = vdwg.mxu0
    %517 = vmatpush.bf16.xpose.msra.mxu0 0
    %518 = vmatpush.bf16.xpose.msra.mxu0 0
    %519 = vmatpush.bf16.xpose.msra.mxu0 0
    %520 = vmatpush.bf16.xpose.msra.mxu0 0
    %521 = vmatpush.bf16.xpose.msra.mxu0 0
    %522 = vmatpush.bf16.xpose.msra.mxu0 0
    %523 = vmatpush.bf16.xpose.msra.mxu0 %v338
    %524 = vmatpush.bf16.xpose.msra.mxu0 %v313
    %525 = vmatmul.bf16.gmra.mxu0 %v82
    %v526 = vpop.f32.mrf.mxu0
    %v527 = vadd.f32 %v514, %v526
    %v528 = vpop.f32.mrf.mxu0
    %529 = vdwg.mxu0
    %530 = vmatpush.bf16.xpose.msra.mxu0 0
    %531 = vmatpush.bf16.xpose.msra.mxu0 0
    %532 = vmatpush.bf16.xpose.msra.mxu0 0
    %533 = vmatpush.bf16.xpose.msra.mxu0 0
    %534 = vmatpush.bf16.xpose.msra.mxu0 0
    %535 = vmatpush.bf16.xpose.msra.mxu0 0
    %536 = vmatpush.bf16.xpose.msra.mxu0 %v339
    %537 = vmatpush.bf16.xpose.msra.mxu0 %v314
    %538 = vmatmul.bf16.gmra.mxu0 %v83
    %v539 = vpop.f32.mrf.mxu0
    %v540 = vadd.f32 %v527, %v539
    %v541 = vpop.f32.mrf.mxu0
    %542 = vdwg.mxu0
    %543 = vmatpush.bf16.xpose.msra.mxu0 0
    %544 = vmatpush.bf16.xpose.msra.mxu0 0
    %545 = vmatpush.bf16.xpose.msra.mxu0 0
    %546 = vmatpush.bf16.xpose.msra.mxu0 0
    %547 = vmatpush.bf16.xpose.msra.mxu0 0
    %548 = vmatpush.bf16.xpose.msra.mxu0 0
    %549 = vmatpush.bf16.xpose.msra.mxu0 %v340
    %550 = vmatpush.bf16.xpose.msra.mxu0 %v315
    %551 = vmatmul.bf16.gmra.mxu0 %v84
    %v552 = vpop.f32.mrf.mxu0
    %v553 = vadd.f32 %v540, %v552
    %v554 = vpop.f32.mrf.mxu0
    %555 = vdwg.mxu0
    %556 = vmatpush.bf16.xpose.msra.mxu0 0
    %557 = vmatpush.bf16.xpose.msra.mxu0 0
    %558 = vmatpush.bf16.xpose.msra.mxu0 0
    %559 = vmatpush.bf16.xpose.msra.mxu0 0
    %560 = vmatpush.bf16.xpose.msra.mxu0 0
    %561 = vmatpush.bf16.xpose.msra.mxu0 0
    %562 = vmatpush.bf16.xpose.msra.mxu0 %v341
    %563 = vmatpush.bf16.xpose.msra.mxu0 %v316
    %564 = vmatmul.bf16.gmra.mxu0 %v85
    %v565 = vpop.f32.mrf.mxu0
    %v566 = vadd.f32 %v553, %v565
    %v567 = vpop.f32.mrf.mxu0
    %568 = vdwg.mxu0
    %569 = vmatpush.bf16.xpose.msra.mxu0 0
    %570 = vmatpush.bf16.xpose.msra.mxu0 0
    %571 = vmatpush.bf16.xpose.msra.mxu0 0
    %572 = vmatpush.bf16.xpose.msra.mxu0 0
    %573 = vmatpush.bf16.xpose.msra.mxu0 0
    %574 = vmatpush.bf16.xpose.msra.mxu0 0
    %575 = vmatpush.bf16.xpose.msra.mxu0 %v342
    %576 = vmatpush.bf16.xpose.msra.mxu0 %v317
    %577 = vmatmul.bf16.gmra.mxu0 %v86
    %v578 = vpop.f32.mrf.mxu0
    %v579 = vadd.f32 %v566, %v578
    %v580 = vpop.f32.mrf.mxu0
    %581 = vdwg.mxu0
    %582 = vmatpush.bf16.xpose.msra.mxu0 0
    %583 = vmatpush.bf16.xpose.msra.mxu0 0
    %584 = vmatpush.bf16.xpose.msra.mxu0 0
    %585 = vmatpush.bf16.xpose.msra.mxu0 0
    %586 = vmatpush.bf16.xpose.msra.mxu0 0
    %587 = vmatpush.bf16.xpose.msra.mxu0 0
    %588 = vmatpush.bf16.xpose.msra.mxu0 %v343
    %589 = vmatpush.bf16.xpose.msra.mxu0 %v318
    %590 = vmatmul.bf16.gmra.mxu0 %v87
    %v591 = vpop.f32.mrf.mxu0
    %v592 = vadd.f32 %v579, %v591
    %v593 = vpop.f32.mrf.mxu0
    %594 = vdwg.mxu0
    %595 = vmatpush.bf16.xpose.msra.mxu0 0
    %596 = vmatpush.bf16.xpose.msra.mxu0 0
    %597 = vmatpush.bf16.xpose.msra.mxu0 0
    %598 = vmatpush.bf16.xpose.msra.mxu0 0
    %599 = vmatpush.bf16.xpose.msra.mxu0 0
    %600 = vmatpush.bf16.xpose.msra.mxu0 0
    %601 = vmatpush.bf16.xpose.msra.mxu0 %v344
    %602 = vmatpush.bf16.xpose.msra.mxu0 %v319
    %603 = vmatmul.bf16.gmra.mxu0 %v88
    %v604 = vpop.f32.mrf.mxu0
    %v605 = vadd.f32 %v592, %v604
    %v606 = vpop.f32.mrf.mxu0
    %607 = vdwg.mxu0
    %608 = vmatpush.bf16.xpose.msra.mxu0 0
    %609 = vmatpush.bf16.xpose.msra.mxu0 0
    %610 = vmatpush.bf16.xpose.msra.mxu0 0
    %611 = vmatpush.bf16.xpose.msra.mxu0 0
    %612 = vmatpush.bf16.xpose.msra.mxu0 0
    %613 = vmatpush.bf16.xpose.msra.mxu0 0
    %614 = vmatpush.bf16.xpose.msra.mxu0 %v345
    %615 = vmatpush.bf16.xpose.msra.mxu0 %v320
    %616 = vmatmul.bf16.gmra.mxu0 %v89
    %v617 = vpop.f32.mrf.mxu0
    %v618 = vadd.f32 %v605, %v617
    %v619 = vpop.f32.mrf.mxu0
    %620 = vdwg.mxu0
    %621 = vmatpush.bf16.xpose.msra.mxu0 0
    %622 = vmatpush.bf16.xpose.msra.mxu0 0
    %623 = vmatpush.bf16.xpose.msra.mxu0 0
    %624 = vmatpush.bf16.xpose.msra.mxu0 0
    %625 = vmatpush.bf16.xpose.msra.mxu0 0
    %626 = vmatpush.bf16.xpose.msra.mxu0 0
    %627 = vmatpush.bf16.xpose.msra.mxu0 %v346
    %628 = vmatpush.bf16.xpose.msra.mxu0 %v321
    %629 = vmatmul.bf16.gmra.mxu0 %v90
    %v630 = vpop.f32.mrf.mxu0
    %v631 = vadd.f32 %v618, %v630
    %v632 = vpop.f32.mrf.mxu0
    %633 = vdwg.mxu0
    %634 = vmatpush.bf16.xpose.msra.mxu0 0
    %635 = vmatpush.bf16.xpose.msra.mxu0 0
    %636 = vmatpush.bf16.xpose.msra.mxu0 0
    %637 = vmatpush.bf16.xpose.msra.mxu0 0
    %638 = vmatpush.bf16.xpose.msra.mxu0 0
    %639 = vmatpush.bf16.xpose.msra.mxu0 0
    %640 = vmatpush.bf16.xpose.msra.mxu0 %v347
    %641 = vmatpush.bf16.xpose.msra.mxu0 %v322
    %642 = vmatmul.bf16.gmra.mxu0 %v91
    %v643 = vpop.f32.mrf.mxu0
    %v644 = vadd.f32 %v631, %v643
    %v645 = vpop.f32.mrf.mxu0
    %646 = vdwg.mxu0
    %647 = vmatpush.bf16.xpose.msra.mxu0 0
    %648 = vmatpush.bf16.xpose.msra.mxu0 0
    %649 = vmatpush.bf16.xpose.msra.mxu0 0
    %650 = vmatpush.bf16.xpose.msra.mxu0 0
    %651 = vmatpush.bf16.xpose.msra.mxu0 0
    %652 = vmatpush.bf16.xpose.msra.mxu0 0
    %653 = vmatpush.bf16.xpose.msra.mxu0 %v348
    %654 = vmatpush.bf16.xpose.msra.mxu0 %v323
    %655 = vmatmul.bf16.gmra.mxu0 %v92
    %v656 = vpop.f32.mrf.mxu0
    %v657 = vadd.f32 %v644, %v656
    %v658 = vpop.f32.mrf.mxu0
    %659 = vdwg.mxu0
    %660 = vmatpush.bf16.xpose.msra.mxu0 0
    %661 = vmatpush.bf16.xpose.msra.mxu0 0
    %662 = vmatpush.bf16.xpose.msra.mxu0 0
    %663 = vmatpush.bf16.xpose.msra.mxu0 0
    %664 = vmatpush.bf16.xpose.msra.mxu0 0
    %665 = vmatpush.bf16.xpose.msra.mxu0 0
    %666 = vmatpush.bf16.xpose.msra.mxu0 %v349
    %667 = vmatpush.bf16.xpose.msra.mxu0 %v324
    %668 = vmatmul.bf16.gmra.mxu0 %v93
    %v669 = vpop.f32.mrf.mxu0
    %v670 = vadd.f32 %v657, %v669
    %v671 = vpop.f32.mrf.mxu0
    %672 = vdwg.mxu0
    %673 = vmatpush.bf16.xpose.msra.mxu0 0
    %674 = vmatpush.bf16.xpose.msra.mxu0 0
    %675 = vmatpush.bf16.xpose.msra.mxu0 0
    %676 = vmatpush.bf16.xpose.msra.mxu0 0
    %677 = vmatpush.bf16.xpose.msra.mxu0 0
    %678 = vmatpush.bf16.xpose.msra.mxu0 0
    %679 = vmatpush.bf16.xpose.msra.mxu0 %v350
    %680 = vmatpush.bf16.xpose.msra.mxu0 %v325
    %681 = vmatmul.bf16.gmra.mxu0 %v94
    %v682 = vpop.f32.mrf.mxu0
    %v683 = vadd.f32 %v670, %v682
    %v684 = vpop.f32.mrf.mxu0
    %685 = vdwg.mxu0
    %686 = vmatpush.bf16.xpose.msra.mxu0 0
    %687 = vmatpush.bf16.xpose.msra.mxu0 0
    %688 = vmatpush.bf16.xpose.msra.mxu0 0
    %689 = vmatpush.bf16.xpose.msra.mxu0 0
    %690 = vmatpush.bf16.xpose.msra.mxu0 0
    %691 = vmatpush.bf16.xpose.msra.mxu0 0
    %692 = vmatpush.bf16.xpose.msra.mxu0 %v351
    %693 = vmatpush.bf16.xpose.msra.mxu0 %v326
    %694 = vmatmul.bf16.gmra.mxu0 %v95
    %v695 = vpop.f32.mrf.mxu0
    %v696 = vadd.f32 %v683, %v695
    %v697 = vpop.f32.mrf.mxu0
    %698 = vdwg.mxu0
    %699 = vmatpush.bf16.xpose.msra.mxu0 0
    %700 = vmatpush.bf16.xpose.msra.mxu0 0
    %701 = vmatpush.bf16.xpose.msra.mxu0 0
    %702 = vmatpush.bf16.xpose.msra.mxu0 0
    %703 = vmatpush.bf16.xpose.msra.mxu0 0
    %704 = vmatpush.bf16.xpose.msra.mxu0 0
    %705 = vmatpush.bf16.xpose.msra.mxu0 %v352
    %706 = vmatpush.bf16.xpose.msra.mxu0 %v327
    %707 = vmatmul.bf16.gmra.mxu0 %v96
    %v708 = vpop.f32.mrf.mxu0
    %v709 = vadd.f32 %v696, %v708
    %v710 = vpop.f32.mrf.mxu0
    %711 = vdwg.mxu0
    %712 = vmatpush.bf16.xpose.msra.mxu0 0
    %713 = vmatpush.bf16.xpose.msra.mxu0 0
    %714 = vmatpush.bf16.xpose.msra.mxu0 0
    %715 = vmatpush.bf16.xpose.msra.mxu0 0
    %716 = vmatpush.bf16.xpose.msra.mxu0 0
    %717 = vmatpush.bf16.xpose.msra.mxu0 0
    %718 = vmatpush.bf16.xpose.msra.mxu0 %v353
    %719 = vmatpush.bf16.xpose.msra.mxu0 %v328
    %720 = vmatmul.bf16.gmra.mxu0 %v97
    %v721 = vpop.f32.mrf.mxu0
    %v722 = vadd.f32 %v709, %v721
    %v723 = vpop.f32.mrf.mxu0
    %724 = vdwg.mxu0
    %725 = vmatpush.bf16.xpose.msra.mxu0 0
    %726 = vmatpush.bf16.xpose.msra.mxu0 0
    %727 = vmatpush.bf16.xpose.msra.mxu0 0
    %728 = vmatpush.bf16.xpose.msra.mxu0 0
    %729 = vmatpush.bf16.xpose.msra.mxu0 0
    %730 = vmatpush.bf16.xpose.msra.mxu0 0
    %731 = vmatpush.bf16.xpose.msra.mxu0 %v411
    %732 = vmatpush.bf16.xpose.msra.mxu0 %v408
    %733 = vmatmul.bf16.gmra.mxu0 %v405
    %v734 = vpop.f32.mrf.mxu0
    %v735 = vadd.f32 %v722, %v734
    %v736 = vpop.f32.mrf.mxu0
    %737 = vdwg.mxu0
    %v738 = vmax.f32 %v735, 0.0
    %v739 = vld [vmem:[%s3] sm:$0xff]
    %v740 = vld [vmem:[%s3 + $0x8] sm:$0xff]
    %v741 = vld [vmem:[%s3 + $0x10] sm:$0xff]
    %v742 = vld [vmem:[%s3 + $0x18] sm:$0xff]
    %v743 = vld [vmem:[%s2 + $0x1] sm:$0x1]
    %v744 = vperm.slane %v743, 0
    %vm745 = vcmask 261120
    %v747 = vsel %vm745, %v738, 0
    %749 = vmatpush.msra.mxu0 0.0
    %750 = vmatpush.msra.mxu0 0.0
    %751 = vmatpush.msra.mxu0 0.0
    %752 = vmatpush.msra.mxu0 0.0
    %753 = vmatpush.msra.mxu0 0.0
    %754 = vmatpush.msra.mxu0 0.0
    %755 = vmatpush.msra.mxu0 0.0
    %756 = vmatpush.msra.mxu0 0.0
    %757 = vmatpush.msra.mxu0 0.0
    %758 = vmatpush.msra.mxu0 0.0
    %759 = vmatpush.msra.mxu0 0.0
    %760 = vmatpush.msra.mxu0 0.0
    %761 = vmatpush.msra.mxu0 %v742
    %762 = vmatpush.msra.mxu0 %v741
    %763 = vmatpush.msra.mxu0 %v740
    %764 = vmatpush.msra.mxu0 %v739
    %765 = vmatmul.f32.gmra.mxu0 %v747
    %v766 = vpop.f32.mrf.mxu0
    %v767 = vadd.f32 %v744, %v766
    %768 = vdwg.mxu0
    %vm769 = vcmask 64512
    %770 = vst.msk [vmem:[#allocation7] sm:$0xff] %vm769, %v767
    // Predicated region
    $region26: #{tpu_custom_call.1} parent=1 // pred_check
      _
    $region27: #{tpu_custom_call.1} parent=1 // pred_check_branch
      %772 = sbr.rel (0) target = $region29
    $region28: #{tpu_custom_call.1} parent=1 // pred_region
      %774 = vsyncadd [#allocation4], 0
      %s776 = sshll.u32 [#allocation7], 4
      %s777 = int_to_ptr.vmem [resolvable:$true] %s776
      %s778 = sshll.u32 %s4, 4
      %s779 = int_to_ptr.hbm [resolvable:$true] %s778
      %781 = dma.vmem_to_hbm [thread:$0]  %s777, 128, %s779, [#allocation4]
    $region29: #{tpu_custom_call.1} parent=1 // pred_fallthru
      _
    // Predicated region
    $region30: #{tpu_custom_call.1} parent=1 // pred_check
      _
    $region31: #{tpu_custom_call.1} parent=1 // pred_check_branch
      %783 = sbr.rel (0) target = $region33
    $region32: #{tpu_custom_call.1} parent=1 // pred_region
      %785 = dma.done [#allocation4], 128
    $region33: #{tpu_custom_call.1} parent=1 // pred_fallthru
      _
    %786 = vsyncpa [#allocation3], 1
    %787 = vsyncpa [#allocation6], 1
    %788 = vsyncpa [#allocation4], 1

</llo_original>
